<compile_context>
chip_gen: v7x
topology: tpu7x:2x2x1
jax: 0.10.0
libtpu: 0.0.40
codegen_flags: <defaults>
</compile_context>

<pallas_src>
import math

import jax
import jax.numpy as jnp
from jax.experimental import pallas as pl
from jax.experimental.pallas import tpu as pltpu

LEAKY_SLOPE = 0.01        # PyTorch nn.LeakyReLU default negative_slope
LANE = 128                # TPU lane width (last dim)
SUBLANE = 8               # sublane granule (second-to-last dim)
NUM_LAYERS = 6
NUM_MID = NUM_LAYERS - 2  # layers 2..5 are (hidden, hidden)


def _round_up(x, m):
    return ((x + m - 1) // m) * m


def _cdiv(a, b):
    return (a + b - 1) // b


# --------------------------------------------------------------------------- #
# Kernel: one batch tile through the full 6-layer MLP.
# --------------------------------------------------------------------------- #
def dqn_mlp_kernel(x_ref, w1_ref, b1_ref, wm_ref, bm_ref, wl_ref, bl_ref, out_ref):
    """
    x_ref:   (TB, OBS_F)          bf16  lane-padded activations for this tile
    w1_ref:  (OBS_F, HID_F)       bf16  layer-1 weight (in, out), zero-padded
    b1_ref:  (1, HID_F)           f32   layer-1 bias
    wm_ref:  (4, HID_F, HID_F)    bf16  layers 2-5 weights, packed
    bm_ref:  (4, 1, HID_F)        f32   layers 2-5 biases, packed
    wl_ref:  (HID_F, OUT_F)       bf16  layer-6 weight
    bl_ref:  (1, OUT_F)           f32   layer-6 bias
    out_ref: (TB, OUT_F)          f32   (caller slices the valid lanes/rows)
    """
    def leaky(h):
        # max(h, 0.01*h) == LeakyReLU(0.01) for slope in (0, 1)
        return jnp.maximum(h, LEAKY_SLOPE * h)

    # Layer 1: obs -> hidden
    h = jnp.dot(x_ref[...], w1_ref[...],
                preferred_element_type=jnp.float32) + b1_ref[...]
    h = leaky(h).astype(jnp.bfloat16)

    # Layers 2-5: hidden -> hidden (static unroll over the packed weights)
    for i in range(NUM_MID):
        h = jnp.dot(h, wm_ref[i],
                    preferred_element_type=jnp.float32) + bm_ref[i]
        h = leaky(h).astype(jnp.bfloat16)

    # Layer 6: hidden -> num_outputs, no activation
    out = jnp.dot(h, wl_ref[...],
                  preferred_element_type=jnp.float32) + bl_ref[...]
    out_ref[...] = out.astype(out_ref.dtype)


# --------------------------------------------------------------------------- #
# One-time weight/bias packing (do this at init, NOT per forward call).
# --------------------------------------------------------------------------- #
def pack_params(params):
    """params: list of 6 (w, b); w is (in, out), b is (1, out) or (out,).

    Returns zero-padded, lane-dense operands:
      w1 (OBS_F, HID_F) bf16, b1 (1, HID_F) f32,
      wm (4, HID_F, HID_F) bf16, bm (4, 1, HID_F) f32,
      wl (HID_F, OUT_F) bf16, bl (1, OUT_F) f32
    """
    obs_dim = params[0][0].shape[0]
    hidden = params[0][0].shape[1]
    num_outputs = params[-1][0].shape[1]

    obs_f = _round_up(obs_dim, LANE)
    hid_f = _round_up(hidden, LANE)
    out_f = _round_up(num_outputs, LANE)

    def pad_w(w, rows, cols):
        p = jnp.zeros((rows, cols), jnp.bfloat16)
        return p.at[:w.shape[0], :w.shape[1]].set(w.astype(jnp.bfloat16))

    def pad_b(b, cols):
        p = jnp.zeros((1, cols), jnp.float32)
        return p.at[0, :b.reshape(-1).shape[0]].set(b.reshape(-1).astype(jnp.float32))

    w1 = pad_w(params[0][0], obs_f, hid_f)
    b1 = pad_b(params[0][1], hid_f)

    wm = jnp.stack([pad_w(params[i][0], hid_f, hid_f) for i in range(1, 1 + NUM_MID)])
    bm = jnp.stack([pad_b(params[i][1], hid_f) for i in range(1, 1 + NUM_MID)])

    wl = pad_w(params[-1][0], hid_f, out_f)
    bl = pad_b(params[-1][1], out_f)

    dims = (obs_dim, hidden, num_outputs, obs_f, hid_f, out_f)
    return (w1, b1, wm, bm, wl, bl), dims


# --------------------------------------------------------------------------- #
# Forward pass.
# --------------------------------------------------------------------------- #
def dqn_forward(x, packed, dims):
    """x: (B, obs_dim) float32. packed/dims: output of pack_params."""
    w1, b1, wm, bm, wl, bl = packed
    obs_dim, hidden, num_outputs, obs_f, hid_f, out_f = dims
    B = x.shape[0]

    # Batch tile: multiple of 8 sublanes, capped at 512 rows (bandwidth sweet
    # spot), and chosen so there are >= 2 grid steps whenever the batch allows
    # it (lets dimension_semantics=("parallel",) shard across v7x's 2 TCs
    # while minimizing batch padding).
    min_rows = _round_up(B, SUBLANE)
    if min_rows <= SUBLANE:
        tb = min_rows
    else:
        tb = min(512, _round_up(_cdiv(min_rows, 2), SUBLANE))
    padded_b = _round_up(B, tb)
    grid = (padded_b // tb,)

    # Lane/batch-pad the input and stream it in bf16 (half the HBM bytes).
    # Padded rows/lanes are zero; zero-padded weight rows and bias lanes keep
    # padded lanes exactly 0 through every LeakyReLU, so they never leak into
    # valid outputs.
    x_padded = jnp.zeros((padded_b, obs_f), jnp.bfloat16)
    x_padded = x_padded.at[:B, :obs_dim].set(x.astype(jnp.bfloat16))

    # VMEM budget: double-buffered activation tiles + (default double-buffered)
    # packed weights/biases + live f32/bf16 intermediates, with headroom.
    w_resident = 2 * ((obs_f * hid_f + NUM_MID * hid_f * hid_f + hid_f * out_f) * 2
                      + ((1 + NUM_MID) * hid_f + out_f) * 4)
    act_resident = 2 * tb * obs_f * 2 + 2 * tb * out_f * 4
    live_h = 2 * tb * hid_f * 4
    vmem_limit = min(max(int(1.5 * (w_resident + act_resident + live_h)) + (4 << 20),
                         32 << 20),
                     48 << 20)

    out_padded = pl.pallas_call(
        dqn_mlp_kernel,
        out_shape=jax.ShapeDtypeStruct((padded_b, out_f), jnp.float32),
        grid_spec=pltpu.PrefetchScalarGridSpec(
            num_scalar_prefetch=0,
            grid=grid,
            in_specs=[
                # Activation tile marches over the batch axis.
                pl.BlockSpec((tb, obs_f), lambda i: (i, 0)),
                # Weights / biases: constant block index -> VMEM-resident,
                # DMA'd once and reused by every batch tile.
                pl.BlockSpec((obs_f, hid_f), lambda i: (0, 0)),
                pl.BlockSpec((1, hid_f), lambda i: (0, 0)),
                pl.BlockSpec((NUM_MID, hid_f, hid_f), lambda i: (0, 0, 0)),
                pl.BlockSpec((NUM_MID, 1, hid_f), lambda i: (0, 0, 0)),
                pl.BlockSpec((hid_f, out_f), lambda i: (0, 0)),
                pl.BlockSpec((1, out_f), lambda i: (0, 0)),
            ],
            out_specs=pl.BlockSpec((tb, out_f), lambda i: (i, 0)),
        ),
        compiler_params=pltpu.CompilerParams(
            # Batch tiles are independent -> shard across v7x's 2 TensorCores.
            dimension_semantics=("parallel",),
            vmem_limit_bytes=vmem_limit,
        ),
    )(x_padded, w1, b1, wm, bm, wl, bl)

    return out_padded[:B, :num_outputs]


# --------------------------------------------------------------------------- #
# Parameter init + pure-JAX reference (matches the PyTorch module).
# --------------------------------------------------------------------------- #
def init_params(key, obs_dim, hidden, num_outputs):
    """Deterministic init mimicking nn.Linear shapes (stored transposed: (in, out))."""
    dims = [obs_dim] + [hidden] * 5 + [num_outputs]
    params = []
    for i in range(NUM_LAYERS):
        fan_in, fan_out = dims[i], dims[i + 1]
        key, kw, kb = jax.random.split(key, 3)
        bound = 1.0 / math.sqrt(fan_in)
        w = jax.random.uniform(kw, (fan_in, fan_out), jnp.float32, -bound, bound)
        b = jax.random.uniform(kb, (1, fan_out), jnp.float32, -bound, bound)
        params.append((w, b))
    return params


def reference_forward(x, params):
    h = x
    for i, (w, b) in enumerate(params):
        h = h @ w + b
        if i < NUM_LAYERS - 1:
            h = jnp.where(h > 0, h, LEAKY_SLOPE * h)
    return h


if __name__ == "__main__":
    key = jax.random.PRNGKey(0)
    kx, kp = jax.random.split(key)

    batch = 8
    obs_dim = 16
    hidden = 32
    num_outputs = 4

    x = jax.random.normal(kx, (batch, obs_dim), jnp.float32)
    params = init_params(kp, obs_dim, hidden, num_outputs)

    # Pack/cast weights ONCE (would live alongside the parameters in practice).
    packed, pack_dims = pack_params(params)
    packed = jax.block_until_ready(packed)

    out = dqn_forward(x, packed, pack_dims)
    out = jax.block_until_ready(out)

    ref = reference_forward(x, params)
    assert out.shape == (batch, num_outputs)
    # bf16 matmul operands / bf16 inter-layer activations with f32 accumulation
    # -> slightly looser tolerance than pure f32.
    assert jnp.allclose(out, ref, atol=2e-2, rtol=2e-2), "mismatch vs reference"

    print("KERNEL_OK")
</pallas_src>

<mosaic_0001>
module attributes {stable_mosaic.version = 11 : i64} {
  func.func @dqn_mlp_kernel(%arg0: i32, %arg1: memref<8x128xbf16, #tpu.memory_space<vmem>>, %arg2: memref<128x128xbf16, #tpu.memory_space<vmem>>, %arg3: memref<1x128xf32, #tpu.memory_space<vmem>>, %arg4: memref<4x128x128xbf16, #tpu.memory_space<vmem>>, %arg5: memref<4x1x128xf32, #tpu.memory_space<vmem>>, %arg6: memref<128x128xbf16, #tpu.memory_space<vmem>>, %arg7: memref<1x128xf32, #tpu.memory_space<vmem>>, %arg8: memref<8x128xf32, #tpu.memory_space<vmem>>) attributes {dimension_semantics = [#tpu.dimension_semantics<parallel>], iteration_bounds = array<i64: 1>, scalar_prefetch = 0 : i64, scratch_operands = 0 : i64, tpu.core_type = #tpu.core_type<tc>, window_params = [{transform_indices = @transform_0, window_bounds = array<i64: 8, 128>}, {pipeline_mode = #tpu.pipeline_mode<synchronous>, transform_indices = @transform_1, window_bounds = array<i64: 128, 128>}, {pipeline_mode = #tpu.pipeline_mode<synchronous>, transform_indices = @transform_2, window_bounds = array<i64: 1, 128>}, {pipeline_mode = #tpu.pipeline_mode<synchronous>, transform_indices = @transform_3, window_bounds = array<i64: 4, 128, 128>}, {pipeline_mode = #tpu.pipeline_mode<synchronous>, transform_indices = @transform_4, window_bounds = array<i64: 4, 1, 128>}, {pipeline_mode = #tpu.pipeline_mode<synchronous>, transform_indices = @transform_5, window_bounds = array<i64: 128, 128>}, {pipeline_mode = #tpu.pipeline_mode<synchronous>, transform_indices = @transform_6, window_bounds = array<i64: 1, 128>}, {transform_indices = @transform_7, window_bounds = array<i64: 8, 128>}]} {
    %c0 = arith.constant 0 : index
    %c0_0 = arith.constant 0 : index
    %0 = vector.load %arg1[%c0, %c0_0] : memref<8x128xbf16, #tpu.memory_space<vmem>>, vector<8x128xbf16>
    %c0_1 = arith.constant 0 : index
    %c0_2 = arith.constant 0 : index
    %1 = vector.load %arg2[%c0_1, %c0_2] : memref<128x128xbf16, #tpu.memory_space<vmem>>, vector<128x128xbf16>
    %cst = arith.constant dense<0.000000e+00> : vector<8x128xf32>
    %2 = tpu.matmul %0, %1, %cst {dimension_numbers = #tpu.dot_dimension_numbers<[1], [0], [0], [1], [0, 0, 1, 1], [], []>} : vector<8x128xbf16>, vector<128x128xbf16>, vector<8x128xf32> -> vector<8x128xf32>
    %c0_3 = arith.constant 0 : index
    %c0_4 = arith.constant 0 : index
    %3 = vector.load %arg3[%c0_3, %c0_4] : memref<1x128xf32, #tpu.memory_space<vmem>>, vector<1x128xf32>
    %4 = vector.broadcast %3 : vector<1x128xf32> to vector<8x128xf32>
    %5 = arith.addf %2, %4 : vector<8x128xf32>
    %cst_5 = arith.constant 0.00999999977 : f32
    %6 = vector.broadcast %cst_5 : f32 to vector<8x128xf32>
    %7 = arith.mulf %6, %5 : vector<8x128xf32>
    %8 = arith.maximumf %5, %7 : vector<8x128xf32>
    %9 = arith.truncf %8 : vector<8x128xf32> to vector<8x128xbf16>
    %c0_6 = arith.constant 0 : index
    %c0_7 = arith.constant 0 : index
    %c0_8 = arith.constant 0 : index
    %10 = vector.load %arg4[%c0_6, %c0_7, %c0_8] : memref<4x128x128xbf16, #tpu.memory_space<vmem>>, vector<1x128x128xbf16>
    %11 = vector.shape_cast %10 : vector<1x128x128xbf16> to vector<128x128xbf16>
    %cst_9 = arith.constant dense<0.000000e+00> : vector<8x128xf32>
    %12 = tpu.matmul %9, %11, %cst_9 {dimension_numbers = #tpu.dot_dimension_numbers<[1], [0], [0], [1], [0, 0, 1, 1], [], []>} : vector<8x128xbf16>, vector<128x128xbf16>, vector<8x128xf32> -> vector<8x128xf32>
    %c0_10 = arith.constant 0 : index
    %c0_11 = arith.constant 0 : index
    %c0_12 = arith.constant 0 : index
    %13 = vector.load %arg5[%c0_10, %c0_11, %c0_12] : memref<4x1x128xf32, #tpu.memory_space<vmem>>, vector<1x1x128xf32>
    %14 = vector.shape_cast %13 : vector<1x1x128xf32> to vector<1x128xf32>
    %15 = vector.broadcast %14 : vector<1x128xf32> to vector<8x128xf32>
    %16 = arith.addf %12, %15 : vector<8x128xf32>
    %cst_13 = arith.constant 0.00999999977 : f32
    %17 = vector.broadcast %cst_13 : f32 to vector<8x128xf32>
    %18 = arith.mulf %17, %16 : vector<8x128xf32>
    %19 = arith.maximumf %16, %18 : vector<8x128xf32>
    %20 = arith.truncf %19 : vector<8x128xf32> to vector<8x128xbf16>
    %c1 = arith.constant 1 : index
    %c0_14 = arith.constant 0 : index
    %c0_15 = arith.constant 0 : index
    %21 = vector.load %arg4[%c1, %c0_14, %c0_15] : memref<4x128x128xbf16, #tpu.memory_space<vmem>>, vector<1x128x128xbf16>
    %22 = vector.shape_cast %21 : vector<1x128x128xbf16> to vector<128x128xbf16>
    %cst_16 = arith.constant dense<0.000000e+00> : vector<8x128xf32>
    %23 = tpu.matmul %20, %22, %cst_16 {dimension_numbers = #tpu.dot_dimension_numbers<[1], [0], [0], [1], [0, 0, 1, 1], [], []>} : vector<8x128xbf16>, vector<128x128xbf16>, vector<8x128xf32> -> vector<8x128xf32>
    %c1_17 = arith.constant 1 : index
    %c0_18 = arith.constant 0 : index
    %c0_19 = arith.constant 0 : index
    %24 = vector.load %arg5[%c1_17, %c0_18, %c0_19] : memref<4x1x128xf32, #tpu.memory_space<vmem>>, vector<1x1x128xf32>
    %25 = vector.shape_cast %24 : vector<1x1x128xf32> to vector<1x128xf32>
    %26 = vector.broadcast %25 : vector<1x128xf32> to vector<8x128xf32>
    %27 = arith.addf %23, %26 : vector<8x128xf32>
    %cst_20 = arith.constant 0.00999999977 : f32
    %28 = vector.broadcast %cst_20 : f32 to vector<8x128xf32>
    %29 = arith.mulf %28, %27 : vector<8x128xf32>
    %30 = arith.maximumf %27, %29 : vector<8x128xf32>
    %31 = arith.truncf %30 : vector<8x128xf32> to vector<8x128xbf16>
    %c2 = arith.constant 2 : index
    %c0_21 = arith.constant 0 : index
    %c0_22 = arith.constant 0 : index
    %32 = vector.load %arg4[%c2, %c0_21, %c0_22] : memref<4x128x128xbf16, #tpu.memory_space<vmem>>, vector<1x128x128xbf16>
    %33 = vector.shape_cast %32 : vector<1x128x128xbf16> to vector<128x128xbf16>
    %cst_23 = arith.constant dense<0.000000e+00> : vector<8x128xf32>
    %34 = tpu.matmul %31, %33, %cst_23 {dimension_numbers = #tpu.dot_dimension_numbers<[1], [0], [0], [1], [0, 0, 1, 1], [], []>} : vector<8x128xbf16>, vector<128x128xbf16>, vector<8x128xf32> -> vector<8x128xf32>
    %c2_24 = arith.constant 2 : index
    %c0_25 = arith.constant 0 : index
    %c0_26 = arith.constant 0 : index
    %35 = vector.load %arg5[%c2_24, %c0_25, %c0_26] : memref<4x1x128xf32, #tpu.memory_space<vmem>>, vector<1x1x128xf32>
    %36 = vector.shape_cast %35 : vector<1x1x128xf32> to vector<1x128xf32>
    %37 = vector.broadcast %36 : vector<1x128xf32> to vector<8x128xf32>
    %38 = arith.addf %34, %37 : vector<8x128xf32>
    %cst_27 = arith.constant 0.00999999977 : f32
    %39 = vector.broadcast %cst_27 : f32 to vector<8x128xf32>
    %40 = arith.mulf %39, %38 : vector<8x128xf32>
    %41 = arith.maximumf %38, %40 : vector<8x128xf32>
    %42 = arith.truncf %41 : vector<8x128xf32> to vector<8x128xbf16>
    %c3 = arith.constant 3 : index
    %c0_28 = arith.constant 0 : index
    %c0_29 = arith.constant 0 : index
    %43 = vector.load %arg4[%c3, %c0_28, %c0_29] : memref<4x128x128xbf16, #tpu.memory_space<vmem>>, vector<1x128x128xbf16>
    %44 = vector.shape_cast %43 : vector<1x128x128xbf16> to vector<128x128xbf16>
    %cst_30 = arith.constant dense<0.000000e+00> : vector<8x128xf32>
    %45 = tpu.matmul %42, %44, %cst_30 {dimension_numbers = #tpu.dot_dimension_numbers<[1], [0], [0], [1], [0, 0, 1, 1], [], []>} : vector<8x128xbf16>, vector<128x128xbf16>, vector<8x128xf32> -> vector<8x128xf32>
    %c3_31 = arith.constant 3 : index
    %c0_32 = arith.constant 0 : index
    %c0_33 = arith.constant 0 : index
    %46 = vector.load %arg5[%c3_31, %c0_32, %c0_33] : memref<4x1x128xf32, #tpu.memory_space<vmem>>, vector<1x1x128xf32>
    %47 = vector.shape_cast %46 : vector<1x1x128xf32> to vector<1x128xf32>
    %48 = vector.broadcast %47 : vector<1x128xf32> to vector<8x128xf32>
    %49 = arith.addf %45, %48 : vector<8x128xf32>
    %cst_34 = arith.constant 0.00999999977 : f32
    %50 = vector.broadcast %cst_34 : f32 to vector<8x128xf32>
    %51 = arith.mulf %50, %49 : vector<8x128xf32>
    %52 = arith.maximumf %49, %51 : vector<8x128xf32>
    %53 = arith.truncf %52 : vector<8x128xf32> to vector<8x128xbf16>
    %c0_35 = arith.constant 0 : index
    %c0_36 = arith.constant 0 : index
    %54 = vector.load %arg6[%c0_35, %c0_36] : memref<128x128xbf16, #tpu.memory_space<vmem>>, vector<128x128xbf16>
    %cst_37 = arith.constant dense<0.000000e+00> : vector<8x128xf32>
    %55 = tpu.matmul %53, %54, %cst_37 {dimension_numbers = #tpu.dot_dimension_numbers<[1], [0], [0], [1], [0, 0, 1, 1], [], []>} : vector<8x128xbf16>, vector<128x128xbf16>, vector<8x128xf32> -> vector<8x128xf32>
    %c0_38 = arith.constant 0 : index
    %c0_39 = arith.constant 0 : index
    %56 = vector.load %arg7[%c0_38, %c0_39] : memref<1x128xf32, #tpu.memory_space<vmem>>, vector<1x128xf32>
    %57 = vector.broadcast %56 : vector<1x128xf32> to vector<8x128xf32>
    %58 = arith.addf %55, %57 : vector<8x128xf32>
    %c0_40 = arith.constant 0 : index
    %c0_41 = arith.constant 0 : index
    %59 = vector.load %arg8[%c0_40, %c0_41] : memref<8x128xf32, #tpu.memory_space<vmem>>, vector<8x128xf32>
    tpu.vector_store %arg8[%c0_40, %c0_41], %58 {strides = array<i32>} : memref<8x128xf32, #tpu.memory_space<vmem>>, vector<8x128xf32>,
    return
  }
  func.func @transform_0(%arg0: i32) -> (i32, i32) {
    %c0_i32 = arith.constant 0 : i32
    %c0_i32_0 = arith.constant 0 : i32
    return %arg0, %c0_i32 : i32, i32
  }
  func.func @transform_1(%arg0: i32) -> (i32, i32) {
    %c0_i32 = arith.constant 0 : i32
    %c0_i32_0 = arith.constant 0 : i32
    %c0_i32_1 = arith.constant 0 : i32
    return %c0_i32, %c0_i32_0 : i32, i32
  }
  func.func @transform_2(%arg0: i32) -> (i32, i32) {
    %c0_i32 = arith.constant 0 : i32
    %c0_i32_0 = arith.constant 0 : i32
    %c0_i32_1 = arith.constant 0 : i32
    return %c0_i32, %c0_i32_0 : i32, i32
  }
  func.func @transform_3(%arg0: i32) -> (i32, i32, i32) {
    %c0_i32 = arith.constant 0 : i32
    %c0_i32_0 = arith.constant 0 : i32
    %c0_i32_1 = arith.constant 0 : i32
    %c0_i32_2 = arith.constant 0 : i32
    return %c0_i32, %c0_i32_0, %c0_i32_1 : i32, i32, i32
  }
  func.func @transform_4(%arg0: i32) -> (i32, i32, i32) {
    %c0_i32 = arith.constant 0 : i32
    %c0_i32_0 = arith.constant 0 : i32
    %c0_i32_1 = arith.constant 0 : i32
    %c0_i32_2 = arith.constant 0 : i32
    return %c0_i32, %c0_i32_0, %c0_i32_1 : i32, i32, i32
  }
  func.func @transform_5(%arg0: i32) -> (i32, i32) {
    %c0_i32 = arith.constant 0 : i32
    %c0_i32_0 = arith.constant 0 : i32
    %c0_i32_1 = arith.constant 0 : i32
    return %c0_i32, %c0_i32_0 : i32, i32
  }
  func.func @transform_6(%arg0: i32) -> (i32, i32) {
    %c0_i32 = arith.constant 0 : i32
    %c0_i32_0 = arith.constant 0 : i32
    %c0_i32_1 = arith.constant 0 : i32
    return %c0_i32, %c0_i32_0 : i32, i32
  }
  func.func @transform_7(%arg0: i32) -> (i32, i32) {
    %c0_i32 = arith.constant 0 : i32
    %c0_i32_0 = arith.constant 0 : i32
    return %arg0, %c0_i32 : i32, i32
  }
}

</mosaic_0001>

<llo_original>
// kernel: tpu_custom_call.1
$region0: #{tpu_custom_call.1}
  #allocation0 [shape = 'u32[]', space=smem, size = 0x4, offset = 0x4, fixed_abs, tag = 'smem constant byte address 0x4 - core index']
  #allocation1 [shape = 'u32[144,128]{1,0:T(1,128)}', space=vmem, size = 0x12000, scoped, tag = 'internal scratch']
  %s0 = inlined_call_operand.hbm [shape: bf16[8,128], index: 0, kind: input, shape index: {}]
  %s1 = inlined_call_operand.hbm [shape: bf16[128,128], index: 1, kind: input, shape index: {}]
  %s2 = inlined_call_operand.vmem [shape: f32[1,128], index: 2, kind: input, shape index: {}]
  %s3 = inlined_call_operand.hbm [shape: bf16[4,128,128], index: 3, kind: input, shape index: {}]
  %s4 = inlined_call_operand.vmem [shape: f32[4,1,128], index: 4, kind: input, shape index: {}]
  %s5 = inlined_call_operand.hbm [shape: bf16[128,128], index: 5, kind: input, shape index: {}]
  %s6 = inlined_call_operand.vmem [shape: f32[1,128], index: 6, kind: input, shape index: {}]
  %s7 = inlined_call_operand.hbm [shape: f32[8,128], index: 7, kind: output, shape index: {}]
  %s8 = sld [smem:[#allocation0]]
  $region54: #{tpu_custom_call.1} parent=0
    _
  %s10 = ssub.s32 1, %s8
  %s11 = scalar_select 0, %s10, %s8
  $region1: #{tpu_custom_call.1} parent=0
    #allocation2 [shape = 'u8[2048]{0}', space=vmem, size = 0x800, scoped, tag = 'input window, operand 0, single buffered']
    #allocation3 [shape = 's32[1]{0}', space=sflag, size = 0x4, scoped, tag = 'scoped memory for tpu_custom_call.1']
    #allocation4 [shape = 's32[1]{0}', space=sflag, size = 0x4, scoped, tag = 'scoped memory for tpu_custom_call.1']
    #allocation5 [shape = 'u8[32768]{0}', space=vmem, size = 0x8000, scoped, tag = 'input window, operand 1, single buffered']
    #allocation6 [shape = 's32[1]{0}', space=sflag, size = 0x4, scoped, tag = 'scoped memory for tpu_custom_call.1']
    #allocation7 [shape = 'u8[131072]{0}', space=vmem, size = 0x20000, scoped, tag = 'input window, operand 3, single buffered']
    #allocation8 [shape = 'u8[32768]{0}', space=vmem, size = 0x8000, scoped, tag = 'input window, operand 5, single buffered']
    #allocation9 [shape = 's32[1]{0}', space=sflag, size = 0x4, scoped, tag = 'scoped memory for tpu_custom_call.1']
    #allocation10 [shape = 'u8[4096]{0}', space=vmem, size = 0x1000, scoped, tag = 'output window, operand 0, single buffered']
    %12 = vsyncpa [#allocation3], 0
    %13 = vsyncpa [#allocation6], 0
    %14 = vsyncpa [#allocation9], 0
    %15 = vsyncpa [#allocation4], 0
    // Predicated region
    $region2: #{tpu_custom_call.1} parent=1 // pred_check
      _
    $region3: #{tpu_custom_call.1} parent=1 // pred_check_branch
      %17 = sbr.rel (0) target = $region5
    $region4: #{tpu_custom_call.1} parent=1 // pred_region
      %s19 = ssub.s32 64, 64
      %20 = vsyncadd [#allocation3], %s19
      %s22 = sshll.u32 [#allocation2], 4
      %s23 = int_to_ptr.vmem [resolvable:$true] %s22
      %25 = dma.hbm_to_vmem [thread:$0]  %s0, 64, %s23, [#allocation3]
    $region5: #{tpu_custom_call.1} parent=1 // pred_fallthru
      _
    // Predicated region
    $region6: #{tpu_custom_call.1} parent=1 // pred_check
      _
    $region7: #{tpu_custom_call.1} parent=1 // pred_check_branch
      %27 = sbr.rel (0) target = $region9
    $region8: #{tpu_custom_call.1} parent=1 // pred_region
      %s29 = ssub.s32 1024, 1024
      %30 = vsyncadd [#allocation6], %s29
      %s31 = sshll.u32 [#allocation5], 4
      %s32 = int_to_ptr.vmem [resolvable:$true] %s31
      %37 = dma.hbm_to_vmem [thread:$0]  %s1, 1024, %s32, [#allocation6], 64, 64, 4
    $region9: #{tpu_custom_call.1} parent=1 // pred_fallthru
      _
    // Predicated region
    $region10: #{tpu_custom_call.1} parent=1 // pred_check
      _
    $region11: #{tpu_custom_call.1} parent=1 // pred_check_branch
      %39 = sbr.rel (0) target = $region13
    $region12: #{tpu_custom_call.1} parent=1 // pred_region
      _
    $region13: #{tpu_custom_call.1} parent=1 // pred_fallthru
      _
    // Predicated region
    $region14: #{tpu_custom_call.1} parent=1 // pred_check
      _
    $region15: #{tpu_custom_call.1} parent=1 // pred_check_branch
      %41 = sbr.rel (0) target = $region17
    $region16: #{tpu_custom_call.1} parent=1 // pred_region
      %s43 = ssub.s32 4096, 4096
      %44 = vsyncadd [#allocation6], %s43
      %s45 = sshll.u32 [#allocation7], 4
      %s46 = int_to_ptr.vmem [resolvable:$true] %s45
      %51 = dma.hbm_to_vmem [thread:$0]  %s3, 4096, %s46, [#allocation6], 64, 64, 4
    $region17: #{tpu_custom_call.1} parent=1 // pred_fallthru
      _
    // Predicated region
    $region18: #{tpu_custom_call.1} parent=1 // pred_check
      _
    $region19: #{tpu_custom_call.1} parent=1 // pred_check_branch
      %53 = sbr.rel (0) target = $region21
    $region20: #{tpu_custom_call.1} parent=1 // pred_region
      _
    $region21: #{tpu_custom_call.1} parent=1 // pred_fallthru
      _
    // Predicated region
    $region22: #{tpu_custom_call.1} parent=1 // pred_check
      _
    $region23: #{tpu_custom_call.1} parent=1 // pred_check_branch
      %55 = sbr.rel (0) target = $region25
    $region24: #{tpu_custom_call.1} parent=1 // pred_region
      %s57 = ssub.s32 1024, 1024
      %58 = vsyncadd [#allocation9], %s57
      %s59 = sshll.u32 [#allocation8], 4
      %s60 = int_to_ptr.vmem [resolvable:$true] %s59
      %65 = dma.hbm_to_vmem [thread:$0]  %s5, 1024, %s60, [#allocation9], 64, 64, 4
    $region25: #{tpu_custom_call.1} parent=1 // pred_fallthru
      _
    // Predicated region
    $region26: #{tpu_custom_call.1} parent=1 // pred_check
      _
    $region27: #{tpu_custom_call.1} parent=1 // pred_check_branch
      %67 = sbr.rel (0) target = $region29
    $region28: #{tpu_custom_call.1} parent=1 // pred_region
      _
    $region29: #{tpu_custom_call.1} parent=1 // pred_fallthru
      _
    // Predicated region
    $region30: #{tpu_custom_call.1} parent=1 // pred_check
      _
    $region31: #{tpu_custom_call.1} parent=1 // pred_check_branch
      %69 = sbr.rel (0) target = $region33
    $region32: #{tpu_custom_call.1} parent=1 // pred_region
      %70 = dma.done [#allocation3], 64
    $region33: #{tpu_custom_call.1} parent=1 // pred_fallthru
      _
    // Predicated region
    $region34: #{tpu_custom_call.1} parent=1 // pred_check
      _
    $region35: #{tpu_custom_call.1} parent=1 // pred_check_branch
      %72 = sbr.rel (0) target = $region37
    $region36: #{tpu_custom_call.1} parent=1 // pred_region
      %73 = dma.done [#allocation6], 1024
    $region37: #{tpu_custom_call.1} parent=1 // pred_fallthru
      _
    // Predicated region
    $region38: #{tpu_custom_call.1} parent=1 // pred_check
      _
    $region39: #{tpu_custom_call.1} parent=1 // pred_check_branch
      %75 = sbr.rel (0) target = $region41
    $region40: #{tpu_custom_call.1} parent=1 // pred_region
      %76 = dma.done [#allocation6], 4096
    $region41: #{tpu_custom_call.1} parent=1 // pred_fallthru
      _
    // Predicated region
    $region42: #{tpu_custom_call.1} parent=1 // pred_check
      _
    $region43: #{tpu_custom_call.1} parent=1 // pred_check_branch
      %78 = sbr.rel (0) target = $region45
    $region44: #{tpu_custom_call.1} parent=1 // pred_region
      %79 = dma.done [#allocation9], 1024
    $region45: #{tpu_custom_call.1} parent=1 // pred_fallthru
      _
    %v81 = vld [vmem:[#allocation2] sm:$0xf]
    %v82 = vld [vmem:[#allocation5] sm:$0xf]
    %v83 = vld [vmem:[#allocation5 + $0x4] sm:$0xf]
    %v84 = vld [vmem:[#allocation5 + $0x8] sm:$0xf]
    %v85 = vld [vmem:[#allocation5 + $0xc] sm:$0xf]
    %v86 = vld [vmem:[#allocation5 + $0x10] sm:$0xf]
    %v87 = vld [vmem:[#allocation5 + $0x14] sm:$0xf]
    %v88 = vld [vmem:[#allocation5 + $0x18] sm:$0xf]
    %v89 = vld [vmem:[#allocation5 + $0x1c] sm:$0xf]
    %v90 = vld [vmem:[#allocation5 + $0x20] sm:$0xf]
    %v91 = vld [vmem:[#allocation5 + $0x24] sm:$0xf]
    %v92 = vld [vmem:[#allocation5 + $0x28] sm:$0xf]
    %v93 = vld [vmem:[#allocation5 + $0x2c] sm:$0xf]
    %v94 = vld [vmem:[#allocation5 + $0x30] sm:$0xf]
    %v95 = vld [vmem:[#allocation5 + $0x34] sm:$0xf]
    %v96 = vld [vmem:[#allocation5 + $0x38] sm:$0xf]
    %v97 = vld [vmem:[#allocation5 + $0x3c] sm:$0xf]
    %v98 = vld [vmem:[%s2] sm:$0x1]
    %v100 = vlaneseq
    %v101 = vshrl.u32 %v100, 7
    %v102 = vsub.s32 0, %v101
    %v103 = vrot.slane %v98, %v102
    %v121 = vunpack.c.l.b16 %v82
    %v122 = vunpack.c.l.b16 %v83
    %v123 = vunpack.c.l.b16 %v84
    %v124 = vunpack.c.l.b16 %v85
    %v125 = vunpack.c.l.b16 %v86
    %v126 = vunpack.c.l.b16 %v87
    %v127 = vunpack.c.l.b16 %v88
    %v128 = vunpack.c.l.b16 %v89
    %v129 = vunpack.c.l.b16 %v90
    %v130 = vunpack.c.l.b16 %v91
    %v131 = vunpack.c.l.b16 %v92
    %v132 = vunpack.c.l.b16 %v93
    %v133 = vunpack.c.l.b16 %v94
    %v134 = vunpack.c.l.b16 %v95
    %v135 = vunpack.c.l.b16 %v96
    %v136 = vunpack.c.l.b16 %v97
    %v137 = vpack.c.b16 %v122, %v121
    %v138 = vpack.c.b16 %v124, %v123
    %v139 = vpack.c.b16 %v126, %v125
    %v140 = vpack.c.b16 %v128, %v127
    %v141 = vpack.c.b16 %v130, %v129
    %v142 = vpack.c.b16 %v132, %v131
    %v143 = vpack.c.b16 %v134, %v133
    %v144 = vpack.c.b16 %v136, %v135
    %153 = vmatprep.subr.bf16.mxu0 0
    %154 = vmatpush1.bf16.msra.mxu0 %v137
    %155 = vmatprep.subr.bf16.mxu0 0
    %156 = vmatpush1.bf16.msra.mxu0 %v138
    %157 = vmatprep.subr.bf16.mxu0 0
    %158 = vmatpush1.bf16.msra.mxu0 %v139
    %159 = vmatprep.subr.bf16.mxu0 0
    %160 = vmatpush1.bf16.msra.mxu0 %v140
    %161 = vmatprep.subr.bf16.mxu0 0
    %162 = vmatpush1.bf16.msra.mxu0 %v141
    %163 = vmatprep.subr.bf16.mxu0 0
    %164 = vmatpush1.bf16.msra.mxu0 %v142
    %165 = vmatprep.subr.bf16.mxu0 0
    %166 = vmatpush1.bf16.msra.mxu0 %v143
    %167 = vmatprep.subr.bf16.mxu0 0
    %168 = vmatpush1.bf16.msra.mxu0 %v144
    %169 = vmatprep.subr.bf16.mxu0 0
    %170 = vmatpush1.bf16.msra.mxu0 0
    %171 = vmatprep.subr.bf16.mxu0 0
    %172 = vmatpush1.bf16.msra.mxu0 0
    %173 = vmatprep.subr.bf16.mxu0 0
    %174 = vmatpush1.bf16.msra.mxu0 0
    %175 = vmatprep.subr.bf16.mxu0 0
    %176 = vmatpush1.bf16.msra.mxu0 0
    %177 = vmatprep.subr.bf16.mxu0 0
    %178 = vmatpush1.bf16.msra.mxu0 0
    %179 = vmatprep.subr.bf16.mxu0 0
    %180 = vmatpush1.bf16.msra.mxu0 0
    %181 = vmatprep.subr.bf16.mxu0 0
    %182 = vmatpush1.bf16.msra.mxu0 0
    %183 = vmatprep.subr.bf16.mxu0 0
    %184 = vmatpush1.bf16.msra.mxu0 0
    %185 = vmatprep.mubr.bf16.mxu0 0
    %186 = vmatmul.mubr.bf16.gmra.mrb[0].mxu0 %v81
    %v187 = vpop.f32.mrb[0].mxu0
    %v188 = vadd.f32 %v103, %v187
    %v189 = vpop.f32.mrb[0].mxu0
    %v190 = vpop.f32.mrb[0].mxu0
    %v191 = vpop.f32.mrb[0].mxu0
    %192 = vdwg.mxu0
    %v193 = vmul.f32 %v188, 0.01
    %v194 = vmax.f32 %v188, %v193
    %v195 = vpack.c.bf16 %v194, %v194
    %v196 = vld [vmem:[#allocation7] sm:$0xf]
    %v197 = vld [vmem:[#allocation7 + $0x4] sm:$0xf]
    %v198 = vld [vmem:[#allocation7 + $0x8] sm:$0xf]
    %v199 = vld [vmem:[#allocation7 + $0xc] sm:$0xf]
    %v200 = vld [vmem:[#allocation7 + $0x10] sm:$0xf]
    %v201 = vld [vmem:[#allocation7 + $0x14] sm:$0xf]
    %v202 = vld [vmem:[#allocation7 + $0x18] sm:$0xf]
    %v203 = vld [vmem:[#allocation7 + $0x1c] sm:$0xf]
    %v204 = vld [vmem:[#allocation7 + $0x20] sm:$0xf]
    %v205 = vld [vmem:[#allocation7 + $0x24] sm:$0xf]
    %v206 = vld [vmem:[#allocation7 + $0x28] sm:$0xf]
    %v207 = vld [vmem:[#allocation7 + $0x2c] sm:$0xf]
    %v208 = vld [vmem:[#allocation7 + $0x30] sm:$0xf]
    %v209 = vld [vmem:[#allocation7 + $0x34] sm:$0xf]
    %v210 = vld [vmem:[#allocation7 + $0x38] sm:$0xf]
    %v211 = vld [vmem:[#allocation7 + $0x3c] sm:$0xf]
    %v212 = vld [vmem:[%s4] sm:$0x1]
    %v214 = vlaneseq
    %v215 = vshrl.u32 %v214, 7
    %v216 = vsub.s32 0, %v215
    %v217 = vrot.slane %v212, %v216
    %v235 = vunpack.c.l.b16 %v196
    %v236 = vunpack.c.l.b16 %v197
    %v237 = vunpack.c.l.b16 %v198
    %v238 = vunpack.c.l.b16 %v199
    %v239 = vunpack.c.l.b16 %v200
    %v240 = vunpack.c.l.b16 %v201
    %v241 = vunpack.c.l.b16 %v202
    %v242 = vunpack.c.l.b16 %v203
    %v243 = vunpack.c.l.b16 %v204
    %v244 = vunpack.c.l.b16 %v205
    %v245 = vunpack.c.l.b16 %v206
    %v246 = vunpack.c.l.b16 %v207
    %v247 = vunpack.c.l.b16 %v208
    %v248 = vunpack.c.l.b16 %v209
    %v249 = vunpack.c.l.b16 %v210
    %v250 = vunpack.c.l.b16 %v211
    %v251 = vpack.c.b16 %v236, %v235
    %v252 = vpack.c.b16 %v238, %v237
    %v253 = vpack.c.b16 %v240, %v239
    %v254 = vpack.c.b16 %v242, %v241
    %v255 = vpack.c.b16 %v244, %v243
    %v256 = vpack.c.b16 %v246, %v245
    %v257 = vpack.c.b16 %v248, %v247
    %v258 = vpack.c.b16 %v250, %v249
    %267 = vmatprep.subr.bf16.mxu0 0
    %268 = vmatpush1.bf16.msra.mxu0 %v251
    %269 = vmatprep.subr.bf16.mxu0 0
    %270 = vmatpush1.bf16.msra.mxu0 %v252
    %271 = vmatprep.subr.bf16.mxu0 0
    %272 = vmatpush1.bf16.msra.mxu0 %v253
    %273 = vmatprep.subr.bf16.mxu0 0
    %274 = vmatpush1.bf16.msra.mxu0 %v254
    %275 = vmatprep.subr.bf16.mxu0 0
    %276 = vmatpush1.bf16.msra.mxu0 %v255
    %277 = vmatprep.subr.bf16.mxu0 0
    %278 = vmatpush1.bf16.msra.mxu0 %v256
    %279 = vmatprep.subr.bf16.mxu0 0
    %280 = vmatpush1.bf16.msra.mxu0 %v257
    %281 = vmatprep.subr.bf16.mxu0 0
    %282 = vmatpush1.bf16.msra.mxu0 %v258
    %283 = vmatprep.subr.bf16.mxu0 0
    %284 = vmatpush1.bf16.msra.mxu0 0
    %285 = vmatprep.subr.bf16.mxu0 0
    %286 = vmatpush1.bf16.msra.mxu0 0
    %287 = vmatprep.subr.bf16.mxu0 0
    %288 = vmatpush1.bf16.msra.mxu0 0
    %289 = vmatprep.subr.bf16.mxu0 0
    %290 = vmatpush1.bf16.msra.mxu0 0
    %291 = vmatprep.subr.bf16.mxu0 0
    %292 = vmatpush1.bf16.msra.mxu0 0
    %293 = vmatprep.subr.bf16.mxu0 0
    %294 = vmatpush1.bf16.msra.mxu0 0
    %295 = vmatprep.subr.bf16.mxu0 0
    %296 = vmatpush1.bf16.msra.mxu0 0
    %297 = vmatprep.subr.bf16.mxu0 0
    %298 = vmatpush1.bf16.msra.mxu0 0
    %299 = vmatprep.mubr.bf16.mxu0 0
    %300 = vmatmul.mubr.bf16.gmra.mrb[0].mxu0 %v195
    %v301 = vpop.f32.mrb[0].mxu0
    %v302 = vadd.f32 %v217, %v301
    %v303 = vpop.f32.mrb[0].mxu0
    %v304 = vpop.f32.mrb[0].mxu0
    %v305 = vpop.f32.mrb[0].mxu0
    %306 = vdwg.mxu0
    %v307 = vmul.f32 %v302, 0.01
    %v308 = vmax.f32 %v302, %v307
    %v309 = vpack.c.bf16 %v308, %v308
    %s310 = scalar_lea.vmem [#allocation7], 64
    %v311 = vld [vmem:[%s310] sm:$0xf]
    %v312 = vld [vmem:[%s310 + $0x4] sm:$0xf]
    %v313 = vld [vmem:[%s310 + $0x8] sm:$0xf]
    %v314 = vld [vmem:[%s310 + $0xc] sm:$0xf]
    %v315 = vld [vmem:[%s310 + $0x10] sm:$0xf]
    %v316 = vld [vmem:[%s310 + $0x14] sm:$0xf]
    %v317 = vld [vmem:[%s310 + $0x18] sm:$0xf]
    %v318 = vld [vmem:[%s310 + $0x1c] sm:$0xf]
    %v319 = vld [vmem:[%s310 + $0x20] sm:$0xf]
    %v320 = vld [vmem:[%s310 + $0x24] sm:$0xf]
    %v321 = vld [vmem:[%s310 + $0x28] sm:$0xf]
    %v322 = vld [vmem:[%s310 + $0x2c] sm:$0xf]
    %v323 = vld [vmem:[%s310 + $0x30] sm:$0xf]
    %v324 = vld [vmem:[%s310 + $0x34] sm:$0xf]
    %v325 = vld [vmem:[%s310 + $0x38] sm:$0xf]
    %v326 = vld [vmem:[%s310 + $0x3c] sm:$0xf]
    %s327 = scalar_lea.vmem %s4, 1
    %v328 = vld [vmem:[%s327] sm:$0x1]
    %v330 = vlaneseq
    %v331 = vshrl.u32 %v330, 7
    %v332 = vsub.s32 0, %v331
    %v333 = vrot.slane %v328, %v332
    %v351 = vunpack.c.l.b16 %v311
    %v352 = vunpack.c.l.b16 %v312
    %v353 = vunpack.c.l.b16 %v313
    %v354 = vunpack.c.l.b16 %v314
    %v355 = vunpack.c.l.b16 %v315
    %v356 = vunpack.c.l.b16 %v316
    %v357 = vunpack.c.l.b16 %v317
    %v358 = vunpack.c.l.b16 %v318
    %v359 = vunpack.c.l.b16 %v319
    %v360 = vunpack.c.l.b16 %v320
    %v361 = vunpack.c.l.b16 %v321
    %v362 = vunpack.c.l.b16 %v322
    %v363 = vunpack.c.l.b16 %v323
    %v364 = vunpack.c.l.b16 %v324
    %v365 = vunpack.c.l.b16 %v325
    %v366 = vunpack.c.l.b16 %v326
    %v367 = vpack.c.b16 %v352, %v351
    %v368 = vpack.c.b16 %v354, %v353
    %v369 = vpack.c.b16 %v356, %v355
    %v370 = vpack.c.b16 %v358, %v357
    %v371 = vpack.c.b16 %v360, %v359
    %v372 = vpack.c.b16 %v362, %v361
    %v373 = vpack.c.b16 %v364, %v363
    %v374 = vpack.c.b16 %v366, %v365
    %383 = vmatprep.subr.bf16.mxu0 0
    %384 = vmatpush1.bf16.msra.mxu0 %v367
    %385 = vmatprep.subr.bf16.mxu0 0
    %386 = vmatpush1.bf16.msra.mxu0 %v368
    %387 = vmatprep.subr.bf16.mxu0 0
    %388 = vmatpush1.bf16.msra.mxu0 %v369
    %389 = vmatprep.subr.bf16.mxu0 0
    %390 = vmatpush1.bf16.msra.mxu0 %v370
    %391 = vmatprep.subr.bf16.mxu0 0
    %392 = vmatpush1.bf16.msra.mxu0 %v371
    %393 = vmatprep.subr.bf16.mxu0 0
    %394 = vmatpush1.bf16.msra.mxu0 %v372
    %395 = vmatprep.subr.bf16.mxu0 0
    %396 = vmatpush1.bf16.msra.mxu0 %v373
    %397 = vmatprep.subr.bf16.mxu0 0
    %398 = vmatpush1.bf16.msra.mxu0 %v374
    %399 = vmatprep.subr.bf16.mxu0 0
    %400 = vmatpush1.bf16.msra.mxu0 0
    %401 = vmatprep.subr.bf16.mxu0 0
    %402 = vmatpush1.bf16.msra.mxu0 0
    %403 = vmatprep.subr.bf16.mxu0 0
    %404 = vmatpush1.bf16.msra.mxu0 0
    %405 = vmatprep.subr.bf16.mxu0 0
    %406 = vmatpush1.bf16.msra.mxu0 0
    %407 = vmatprep.subr.bf16.mxu0 0
    %408 = vmatpush1.bf16.msra.mxu0 0
    %409 = vmatprep.subr.bf16.mxu0 0
    %410 = vmatpush1.bf16.msra.mxu0 0
    %411 = vmatprep.subr.bf16.mxu0 0
    %412 = vmatpush1.bf16.msra.mxu0 0
    %413 = vmatprep.subr.bf16.mxu0 0
    %414 = vmatpush1.bf16.msra.mxu0 0
    %415 = vmatprep.mubr.bf16.mxu0 0
    %416 = vmatmul.mubr.bf16.gmra.mrb[0].mxu0 %v309
    %v417 = vpop.f32.mrb[0].mxu0
    %v418 = vadd.f32 %v333, %v417
    %v419 = vpop.f32.mrb[0].mxu0
    %v420 = vpop.f32.mrb[0].mxu0
    %v421 = vpop.f32.mrb[0].mxu0
    %422 = vdwg.mxu0
    %v423 = vmul.f32 %v418, 0.01
    %v424 = vmax.f32 %v418, %v423
    %v425 = vpack.c.bf16 %v424, %v424
    %s426 = scalar_lea.vmem [#allocation7], 128
    %v427 = vld [vmem:[%s426] sm:$0xf]
    %v428 = vld [vmem:[%s426 + $0x4] sm:$0xf]
    %v429 = vld [vmem:[%s426 + $0x8] sm:$0xf]
    %v430 = vld [vmem:[%s426 + $0xc] sm:$0xf]
    %v431 = vld [vmem:[%s426 + $0x10] sm:$0xf]
    %v432 = vld [vmem:[%s426 + $0x14] sm:$0xf]
    %v433 = vld [vmem:[%s426 + $0x18] sm:$0xf]
    %v434 = vld [vmem:[%s426 + $0x1c] sm:$0xf]
    %v435 = vld [vmem:[%s426 + $0x20] sm:$0xf]
    %v436 = vld [vmem:[%s426 + $0x24] sm:$0xf]
    %v437 = vld [vmem:[%s426 + $0x28] sm:$0xf]
    %v438 = vld [vmem:[%s426 + $0x2c] sm:$0xf]
    %v439 = vld [vmem:[%s426 + $0x30] sm:$0xf]
    %v440 = vld [vmem:[%s426 + $0x34] sm:$0xf]
    %v441 = vld [vmem:[%s426 + $0x38] sm:$0xf]
    %v442 = vld [vmem:[%s426 + $0x3c] sm:$0xf]
    %s443 = scalar_lea.vmem %s4, 2
    %v444 = vld [vmem:[%s443] sm:$0x1]
    %v446 = vlaneseq
    %v447 = vshrl.u32 %v446, 7
    %v448 = vsub.s32 0, %v447
    %v449 = vrot.slane %v444, %v448
    %v467 = vunpack.c.l.b16 %v427
    %v468 = vunpack.c.l.b16 %v428
    %v469 = vunpack.c.l.b16 %v429
    %v470 = vunpack.c.l.b16 %v430
    %v471 = vunpack.c.l.b16 %v431
    %v472 = vunpack.c.l.b16 %v432
    %v473 = vunpack.c.l.b16 %v433
    %v474 = vunpack.c.l.b16 %v434
    %v475 = vunpack.c.l.b16 %v435
    %v476 = vunpack.c.l.b16 %v436
    %v477 = vunpack.c.l.b16 %v437
    %v478 = vunpack.c.l.b16 %v438
    %v479 = vunpack.c.l.b16 %v439
    %v480 = vunpack.c.l.b16 %v440
    %v481 = vunpack.c.l.b16 %v441
    %v482 = vunpack.c.l.b16 %v442
    %v483 = vpack.c.b16 %v468, %v467
    %v484 = vpack.c.b16 %v470, %v469
    %v485 = vpack.c.b16 %v472, %v471
    %v486 = vpack.c.b16 %v474, %v473
    %v487 = vpack.c.b16 %v476, %v475
    %v488 = vpack.c.b16 %v478, %v477
    %v489 = vpack.c.b16 %v480, %v479
    %v490 = vpack.c.b16 %v482, %v481
    %499 = vmatprep.subr.bf16.mxu0 0
    %500 = vmatpush1.bf16.msra.mxu0 %v483
    %501 = vmatprep.subr.bf16.mxu0 0
    %502 = vmatpush1.bf16.msra.mxu0 %v484
    %503 = vmatprep.subr.bf16.mxu0 0
    %504 = vmatpush1.bf16.msra.mxu0 %v485
    %505 = vmatprep.subr.bf16.mxu0 0
    %506 = vmatpush1.bf16.msra.mxu0 %v486
    %507 = vmatprep.subr.bf16.mxu0 0
    %508 = vmatpush1.bf16.msra.mxu0 %v487
    %509 = vmatprep.subr.bf16.mxu0 0
    %510 = vmatpush1.bf16.msra.mxu0 %v488
    %511 = vmatprep.subr.bf16.mxu0 0
    %512 = vmatpush1.bf16.msra.mxu0 %v489
    %513 = vmatprep.subr.bf16.mxu0 0
    %514 = vmatpush1.bf16.msra.mxu0 %v490
    %515 = vmatprep.subr.bf16.mxu0 0
    %516 = vmatpush1.bf16.msra.mxu0 0
    %517 = vmatprep.subr.bf16.mxu0 0
    %518 = vmatpush1.bf16.msra.mxu0 0
    %519 = vmatprep.subr.bf16.mxu0 0
    %520 = vmatpush1.bf16.msra.mxu0 0
    %521 = vmatprep.subr.bf16.mxu0 0
    %522 = vmatpush1.bf16.msra.mxu0 0
    %523 = vmatprep.subr.bf16.mxu0 0
    %524 = vmatpush1.bf16.msra.mxu0 0
    %525 = vmatprep.subr.bf16.mxu0 0
    %526 = vmatpush1.bf16.msra.mxu0 0
    %527 = vmatprep.subr.bf16.mxu0 0
    %528 = vmatpush1.bf16.msra.mxu0 0
    %529 = vmatprep.subr.bf16.mxu0 0
    %530 = vmatpush1.bf16.msra.mxu0 0
    %531 = vmatprep.mubr.bf16.mxu0 0
    %532 = vmatmul.mubr.bf16.gmra.mrb[0].mxu0 %v425
    %v533 = vpop.f32.mrb[0].mxu0
    %v534 = vadd.f32 %v449, %v533
    %v535 = vpop.f32.mrb[0].mxu0
    %v536 = vpop.f32.mrb[0].mxu0
    %v537 = vpop.f32.mrb[0].mxu0
    %538 = vdwg.mxu0
    %v539 = vmul.f32 %v534, 0.01
    %v540 = vmax.f32 %v534, %v539
    %v541 = vpack.c.bf16 %v540, %v540
    %s542 = scalar_lea.vmem [#allocation7], 192
    %v543 = vld [vmem:[%s542] sm:$0xf]
    %v544 = vld [vmem:[%s542 + $0x4] sm:$0xf]
    %v545 = vld [vmem:[%s542 + $0x8] sm:$0xf]
    %v546 = vld [vmem:[%s542 + $0xc] sm:$0xf]
    %v547 = vld [vmem:[%s542 + $0x10] sm:$0xf]
    %v548 = vld [vmem:[%s542 + $0x14] sm:$0xf]
    %v549 = vld [vmem:[%s542 + $0x18] sm:$0xf]
    %v550 = vld [vmem:[%s542 + $0x1c] sm:$0xf]
    %v551 = vld [vmem:[%s542 + $0x20] sm:$0xf]
    %v552 = vld [vmem:[%s542 + $0x24] sm:$0xf]
    %v553 = vld [vmem:[%s542 + $0x28] sm:$0xf]
    %v554 = vld [vmem:[%s542 + $0x2c] sm:$0xf]
    %v555 = vld [vmem:[%s542 + $0x30] sm:$0xf]
    %v556 = vld [vmem:[%s542 + $0x34] sm:$0xf]
    %v557 = vld [vmem:[%s542 + $0x38] sm:$0xf]
    %v558 = vld [vmem:[%s542 + $0x3c] sm:$0xf]
    %s559 = scalar_lea.vmem %s4, 3
    %v560 = vld [vmem:[%s559] sm:$0x1]
    %v562 = vlaneseq
    %v563 = vshrl.u32 %v562, 7
    %v564 = vsub.s32 0, %v563
    %v565 = vrot.slane %v560, %v564
    %v583 = vunpack.c.l.b16 %v543
    %v584 = vunpack.c.l.b16 %v544
    %v585 = vunpack.c.l.b16 %v545
    %v586 = vunpack.c.l.b16 %v546
    %v587 = vunpack.c.l.b16 %v547
    %v588 = vunpack.c.l.b16 %v548
    %v589 = vunpack.c.l.b16 %v549
    %v590 = vunpack.c.l.b16 %v550
    %v591 = vunpack.c.l.b16 %v551
    %v592 = vunpack.c.l.b16 %v552
    %v593 = vunpack.c.l.b16 %v553
    %v594 = vunpack.c.l.b16 %v554
    %v595 = vunpack.c.l.b16 %v555
    %v596 = vunpack.c.l.b16 %v556
    %v597 = vunpack.c.l.b16 %v557
    %v598 = vunpack.c.l.b16 %v558
    %v599 = vpack.c.b16 %v584, %v583
    %v600 = vpack.c.b16 %v586, %v585
    %v601 = vpack.c.b16 %v588, %v587
    %v602 = vpack.c.b16 %v590, %v589
    %v603 = vpack.c.b16 %v592, %v591
    %v604 = vpack.c.b16 %v594, %v593
    %v605 = vpack.c.b16 %v596, %v595
    %v606 = vpack.c.b16 %v598, %v597
    %615 = vmatprep.subr.bf16.mxu0 0
    %616 = vmatpush1.bf16.msra.mxu0 %v599
    %617 = vmatprep.subr.bf16.mxu0 0
    %618 = vmatpush1.bf16.msra.mxu0 %v600
    %619 = vmatprep.subr.bf16.mxu0 0
    %620 = vmatpush1.bf16.msra.mxu0 %v601
    %621 = vmatprep.subr.bf16.mxu0 0
    %622 = vmatpush1.bf16.msra.mxu0 %v602
    %623 = vmatprep.subr.bf16.mxu0 0
    %624 = vmatpush1.bf16.msra.mxu0 %v603
    %625 = vmatprep.subr.bf16.mxu0 0
    %626 = vmatpush1.bf16.msra.mxu0 %v604
    %627 = vmatprep.subr.bf16.mxu0 0
    %628 = vmatpush1.bf16.msra.mxu0 %v605
    %629 = vmatprep.subr.bf16.mxu0 0
    %630 = vmatpush1.bf16.msra.mxu0 %v606
    %631 = vmatprep.subr.bf16.mxu0 0
    %632 = vmatpush1.bf16.msra.mxu0 0
    %633 = vmatprep.subr.bf16.mxu0 0
    %634 = vmatpush1.bf16.msra.mxu0 0
    %635 = vmatprep.subr.bf16.mxu0 0
    %636 = vmatpush1.bf16.msra.mxu0 0
    %637 = vmatprep.subr.bf16.mxu0 0
    %638 = vmatpush1.bf16.msra.mxu0 0
    %639 = vmatprep.subr.bf16.mxu0 0
    %640 = vmatpush1.bf16.msra.mxu0 0
    %641 = vmatprep.subr.bf16.mxu0 0
    %642 = vmatpush1.bf16.msra.mxu0 0
    %643 = vmatprep.subr.bf16.mxu0 0
    %644 = vmatpush1.bf16.msra.mxu0 0
    %645 = vmatprep.subr.bf16.mxu0 0
    %646 = vmatpush1.bf16.msra.mxu0 0
    %647 = vmatprep.mubr.bf16.mxu0 0
    %648 = vmatmul.mubr.bf16.gmra.mrb[0].mxu0 %v541
    %v649 = vpop.f32.mrb[0].mxu0
    %v650 = vadd.f32 %v565, %v649
    %v651 = vpop.f32.mrb[0].mxu0
    %v652 = vpop.f32.mrb[0].mxu0
    %v653 = vpop.f32.mrb[0].mxu0
    %654 = vdwg.mxu0
    %v655 = vmul.f32 %v650, 0.01
    %v656 = vmax.f32 %v650, %v655
    %v657 = vpack.c.bf16 %v656, %v656
    %v658 = vld [vmem:[#allocation8] sm:$0xf]
    %v659 = vld [vmem:[#allocation8 + $0x4] sm:$0xf]
    %v660 = vld [vmem:[#allocation8 + $0x8] sm:$0xf]
    %v661 = vld [vmem:[#allocation8 + $0xc] sm:$0xf]
    %v662 = vld [vmem:[#allocation8 + $0x10] sm:$0xf]
    %v663 = vld [vmem:[#allocation8 + $0x14] sm:$0xf]
    %v664 = vld [vmem:[#allocation8 + $0x18] sm:$0xf]
    %v665 = vld [vmem:[#allocation8 + $0x1c] sm:$0xf]
    %v666 = vld [vmem:[#allocation8 + $0x20] sm:$0xf]
    %v667 = vld [vmem:[#allocation8 + $0x24] sm:$0xf]
    %v668 = vld [vmem:[#allocation8 + $0x28] sm:$0xf]
    %v669 = vld [vmem:[#allocation8 + $0x2c] sm:$0xf]
    %v670 = vld [vmem:[#allocation8 + $0x30] sm:$0xf]
    %v671 = vld [vmem:[#allocation8 + $0x34] sm:$0xf]
    %v672 = vld [vmem:[#allocation8 + $0x38] sm:$0xf]
    %v673 = vld [vmem:[#allocation8 + $0x3c] sm:$0xf]
    %v674 = vld [vmem:[%s6] sm:$0x1]
    %v676 = vlaneseq
    %v677 = vshrl.u32 %v676, 7
    %v678 = vsub.s32 0, %v677
    %v679 = vrot.slane %v674, %v678
    %v697 = vunpack.c.l.b16 %v658
    %v698 = vunpack.c.l.b16 %v659
    %v699 = vunpack.c.l.b16 %v660
    %v700 = vunpack.c.l.b16 %v661
    %v701 = vunpack.c.l.b16 %v662
    %v702 = vunpack.c.l.b16 %v663
    %v703 = vunpack.c.l.b16 %v664
    %v704 = vunpack.c.l.b16 %v665
    %v705 = vunpack.c.l.b16 %v666
    %v706 = vunpack.c.l.b16 %v667
    %v707 = vunpack.c.l.b16 %v668
    %v708 = vunpack.c.l.b16 %v669
    %v709 = vunpack.c.l.b16 %v670
    %v710 = vunpack.c.l.b16 %v671
    %v711 = vunpack.c.l.b16 %v672
    %v712 = vunpack.c.l.b16 %v673
    %v713 = vpack.c.b16 %v698, %v697
    %v714 = vpack.c.b16 %v700, %v699
    %v715 = vpack.c.b16 %v702, %v701
    %v716 = vpack.c.b16 %v704, %v703
    %v717 = vpack.c.b16 %v706, %v705
    %v718 = vpack.c.b16 %v708, %v707
    %v719 = vpack.c.b16 %v710, %v709
    %v720 = vpack.c.b16 %v712, %v711
    %729 = vmatprep.subr.bf16.mxu0 0
    %730 = vmatpush1.bf16.msra.mxu0 %v713
    %731 = vmatprep.subr.bf16.mxu0 0
    %732 = vmatpush1.bf16.msra.mxu0 %v714
    %733 = vmatprep.subr.bf16.mxu0 0
    %734 = vmatpush1.bf16.msra.mxu0 %v715
    %735 = vmatprep.subr.bf16.mxu0 0
    %736 = vmatpush1.bf16.msra.mxu0 %v716
    %737 = vmatprep.subr.bf16.mxu0 0
    %738 = vmatpush1.bf16.msra.mxu0 %v717
    %739 = vmatprep.subr.bf16.mxu0 0
    %740 = vmatpush1.bf16.msra.mxu0 %v718
    %741 = vmatprep.subr.bf16.mxu0 0
    %742 = vmatpush1.bf16.msra.mxu0 %v719
    %743 = vmatprep.subr.bf16.mxu0 0
    %744 = vmatpush1.bf16.msra.mxu0 %v720
    %745 = vmatprep.subr.bf16.mxu0 0
    %746 = vmatpush1.bf16.msra.mxu0 0
    %747 = vmatprep.subr.bf16.mxu0 0
    %748 = vmatpush1.bf16.msra.mxu0 0
    %749 = vmatprep.subr.bf16.mxu0 0
    %750 = vmatpush1.bf16.msra.mxu0 0
    %751 = vmatprep.subr.bf16.mxu0 0
    %752 = vmatpush1.bf16.msra.mxu0 0
    %753 = vmatprep.subr.bf16.mxu0 0
    %754 = vmatpush1.bf16.msra.mxu0 0
    %755 = vmatprep.subr.bf16.mxu0 0
    %756 = vmatpush1.bf16.msra.mxu0 0
    %757 = vmatprep.subr.bf16.mxu0 0
    %758 = vmatpush1.bf16.msra.mxu0 0
    %759 = vmatprep.subr.bf16.mxu0 0
    %760 = vmatpush1.bf16.msra.mxu0 0
    %761 = vmatprep.mubr.bf16.mxu0 0
    %762 = vmatmul.mubr.bf16.gmra.mrb[0].mxu0 %v657
    %v763 = vpop.f32.mrb[0].mxu0
    %v764 = vadd.f32 %v679, %v763
    %v765 = vpop.f32.mrb[0].mxu0
    %v766 = vpop.f32.mrb[0].mxu0
    %v767 = vpop.f32.mrb[0].mxu0
    %768 = vdwg.mxu0
    %769 = vst [vmem:[#allocation10] sm:$0xff] %v764
    // Predicated region
    $region46: #{tpu_custom_call.1} parent=1 // pred_check
      _
    $region47: #{tpu_custom_call.1} parent=1 // pred_check_branch
      %771 = sbr.rel (0) target = $region49
    $region48: #{tpu_custom_call.1} parent=1 // pred_region
      %s773 = ssub.s32 128, 128
      %774 = vsyncadd [#allocation4], %s773
      %s776 = sshll.u32 [#allocation10], 4
      %s777 = int_to_ptr.vmem [resolvable:$true] %s776
      %779 = dma.vmem_to_hbm [thread:$0]  %s777, 128, %s7, [#allocation4]
    $region49: #{tpu_custom_call.1} parent=1 // pred_fallthru
      _
    // Predicated region
    $region50: #{tpu_custom_call.1} parent=1 // pred_check
      _
    $region51: #{tpu_custom_call.1} parent=1 // pred_check_branch
      %781 = sbr.rel (0) target = $region53
    $region52: #{tpu_custom_call.1} parent=1 // pred_region
      %782 = dma.done [#allocation4], 128
    $region53: #{tpu_custom_call.1} parent=1 // pred_fallthru
      _
    %783 = vsyncpa [#allocation3], 1
    %784 = vsyncpa [#allocation6], 1
    %785 = vsyncpa [#allocation9], 1
    %786 = vsyncpa [#allocation4], 1

</llo_original>
